<compile_context>
chip_gen: v7x
topology: tpu7x:2x2x1
jax: 0.10.0
libtpu: 0.0.40
codegen_flags: <defaults>
</compile_context>

<pallas_src>
import jax
import jax.numpy as jnp
from jax.experimental import pallas as pl
from jax.experimental.pallas import tpu as pltpu


def _identity_kernel(x_ref, o_ref):
    # Whole-tile pass-through on the VPU. The lane (last) dim is a large
    # multiple of 128, so stores lower to full (unmasked) vector stores.
    o_ref[...] = x_ref[...]


def _sublane_multiple(dtype) -> int:
    # Sublane packing multiple per dtype width (f32: 8, bf16: 16, i8/fp8: 32).
    itemsize = jnp.dtype(dtype).itemsize
    return {4: 8, 2: 16, 1: 32}.get(itemsize, 8)


def _choose_lane_dim(total: int) -> int:
    # Prefer a wide, lane-dense last dim (large multiple of 128).
    for lane in (4096, 2048, 1024, 512, 256, 128):
        if total % lane == 0:
            return lane
    return total  # tiny / ragged input: single row, full width (full-dim block is legal)


def _choose_tile_rows(rows: int, lane: int, itemsize: int, sublane: int) -> int:
    # Target ~2 MiB per tile: with double-buffered input + output (4 tiles
    # resident) this stays far under the v7x 64 MiB VMEM / 32 MiB scoped
    # default while being large enough (>1 MiB) to amortize per-step overhead.
    target = max(sublane, (2 * 1024 * 1024) // (lane * itemsize))
    if rows <= target:
        return rows
    tm = (target // sublane) * sublane
    while tm >= sublane:
        if rows % tm == 0:
            return tm
        tm -= sublane
    return rows  # no aligned divisor found: fall back to a single full block


def cpc_forward(x: jax.Array) -> jax.Array:
    """Identity forward (stand-in for the empty CPC.forward)."""
    orig_shape = x.shape
    total = x.size
    itemsize = jnp.dtype(x.dtype).itemsize

    lane = _choose_lane_dim(total)
    rows = total // lane
    x2d = x.reshape(rows, lane)

    sublane = _sublane_multiple(x.dtype)
    tm = _choose_tile_rows(rows, lane, itemsize, sublane)
    grid = (rows // tm,)

    out2d = pl.pallas_call(
        _identity_kernel,
        out_shape=jax.ShapeDtypeStruct(x2d.shape, x2d.dtype),
        grid=grid,
        in_specs=[pl.BlockSpec((tm, lane), lambda i: (i, 0))],
        out_specs=pl.BlockSpec((tm, lane), lambda i: (i, 0)),
        # Alias output onto the input buffer: no separate output HBM
        # allocation for this pure pass-through.
        input_output_aliases={0: 0},
        compiler_params=pltpu.CompilerParams(
            dimension_semantics=("parallel",),
        ),
    )(x2d)

    return out2d.reshape(orig_shape)


if __name__ == "__main__":
    import numpy as np

    key = jax.random.PRNGKey(0)
    # Small NCHW input consistent with a CPC-style image encoder input.
    x = jax.random.normal(key, (2, 4, 16, 16), dtype=jnp.float32)
    x_host = np.asarray(x)  # snapshot before the (possibly aliased) call

    out = cpc_forward(x)
    out = jax.block_until_ready(out)

    # Sanity check: identity semantics.
    assert out.shape == x_host.shape
    assert np.allclose(np.asarray(out), x_host)

    print("KERNEL_OK")
</pallas_src>

<mosaic_0001>
module attributes {stable_mosaic.version = 11 : i64} {
  func.func @_identity_kernel(%arg0: i32, %arg1: memref<1x2048xf32, #tpu.memory_space<vmem>>, %arg2: memref<1x2048xf32, #tpu.memory_space<vmem>>) attributes {dimension_semantics = [#tpu.dimension_semantics<parallel>], iteration_bounds = array<i64: 1>, scalar_prefetch = 0 : i64, scratch_operands = 0 : i64, tpu.core_type = #tpu.core_type<tc>, window_params = [{transform_indices = @transform_0, window_bounds = array<i64: 1, 2048>}, {transform_indices = @transform_1, window_bounds = array<i64: 1, 2048>}]} {
    %c0 = arith.constant 0 : index
    %c0_0 = arith.constant 0 : index
    %0 = vector.load %arg1[%c0, %c0_0] : memref<1x2048xf32, #tpu.memory_space<vmem>>, vector<1x2048xf32>
    %c0_1 = arith.constant 0 : index
    %c0_2 = arith.constant 0 : index
    %1 = vector.load %arg2[%c0_1, %c0_2] : memref<1x2048xf32, #tpu.memory_space<vmem>>, vector<1x2048xf32>
    tpu.vector_store %arg2[%c0_1, %c0_2], %0 {strides = array<i32>} : memref<1x2048xf32, #tpu.memory_space<vmem>>, vector<1x2048xf32>,
    return
  }
  func.func @transform_0(%arg0: i32) -> (i32, i32) {
    %c0_i32 = arith.constant 0 : i32
    %c0_i32_0 = arith.constant 0 : i32
    return %arg0, %c0_i32 : i32, i32
  }
  func.func @transform_1(%arg0: i32) -> (i32, i32) {
    %c0_i32 = arith.constant 0 : i32
    %c0_i32_0 = arith.constant 0 : i32
    return %arg0, %c0_i32 : i32, i32
  }
}

</mosaic_0001>

<llo_original>
// kernel: tpu_custom_call.1
$region0: #{tpu_custom_call.1}
  #allocation0 [shape = 'u32[]', space=smem, size = 0x4, offset = 0x4, fixed_abs, tag = 'smem constant byte address 0x4 - core index']
  #allocation1 [shape = 'u32[144,128]{1,0:T(1,128)}', space=vmem, size = 0x12000, scoped, tag = 'internal scratch']
  %s0 = inlined_call_operand.hbm [shape: f32[1,2048], index: 0, kind: input, shape index: {}, may-alias: {0,1}]
  %s1 = inlined_call_operand.hbm [shape: f32[1,2048], index: 1, kind: output, shape index: {}, may-alias: {0,1}]
  %s2 = sld [smem:[#allocation0]]
  $region18: #{tpu_custom_call.1} parent=0
    _
  %s4 = ssub.s32 1, %s2
  %s5 = scalar_select 0, %s4, %s2
  $region1: #{tpu_custom_call.1} parent=0
    #allocation2 [shape = 'u8[8192]{0}', space=vmem, size = 0x2000, scoped, tag = 'input window, operand 0, single buffered']
    #allocation3 [shape = 's32[1]{0}', space=sflag, size = 0x4, scoped, tag = 'scoped memory for tpu_custom_call.1']
    #allocation4 [shape = 's32[1]{0}', space=sflag, size = 0x4, scoped, tag = 'scoped memory for tpu_custom_call.1']
    #allocation5 [shape = 'u8[8192]{0}', space=vmem, size = 0x2000, scoped, tag = 'output window, operand 0, single buffered']
    %6 = vsyncpa [#allocation3], 0
    %7 = vsyncpa [#allocation4], 0
    // Predicated region
    $region2: #{tpu_custom_call.1} parent=1 // pred_check
      _
    $region3: #{tpu_custom_call.1} parent=1 // pred_check_branch
      %9 = sbr.rel (0) target = $region5
    $region4: #{tpu_custom_call.1} parent=1 // pred_region
      %s11 = ssub.s32 256, 256
      %12 = vsyncadd [#allocation3], %s11
      %s14 = sshll.u32 [#allocation2], 4
      %s15 = int_to_ptr.vmem [resolvable:$true] %s14
      %17 = dma.hbm_to_vmem [thread:$0]  %s0, 256, %s15, [#allocation3]
    $region5: #{tpu_custom_call.1} parent=1 // pred_fallthru
      _
    // Predicated region
    $region6: #{tpu_custom_call.1} parent=1 // pred_check
      _
    $region7: #{tpu_custom_call.1} parent=1 // pred_check_branch
      %19 = sbr.rel (0) target = $region9
    $region8: #{tpu_custom_call.1} parent=1 // pred_region
      %20 = dma.done [#allocation3], 256
    $region9: #{tpu_custom_call.1} parent=1 // pred_fallthru
      _
    %v21 = vld [vmem:[#allocation2] sm:$0xff]
    %v22 = vld [vmem:[#allocation2 + $0x8] sm:$0xff]
    %23 = vst [vmem:[#allocation5] sm:$0xff] %v21
    %24 = vst [vmem:[#allocation5 + $0x8] sm:$0xff] %v22
    // Predicated region
    $region10: #{tpu_custom_call.1} parent=1 // pred_check
      _
    $region11: #{tpu_custom_call.1} parent=1 // pred_check_branch
      %26 = sbr.rel (0) target = $region13
    $region12: #{tpu_custom_call.1} parent=1 // pred_region
      %s28 = ssub.s32 256, 256
      %29 = vsyncadd [#allocation4], %s28
      %s31 = sshll.u32 [#allocation5], 4
      %s32 = int_to_ptr.vmem [resolvable:$true] %s31
      %34 = dma.vmem_to_hbm [thread:$0]  %s32, 256, %s1, [#allocation4]
    $region13: #{tpu_custom_call.1} parent=1 // pred_fallthru
      _
    // Predicated region
    $region14: #{tpu_custom_call.1} parent=1 // pred_check
      _
    $region15: #{tpu_custom_call.1} parent=1 // pred_check_branch
      %36 = sbr.rel (0) target = $region17
    $region16: #{tpu_custom_call.1} parent=1 // pred_region
      %37 = dma.done [#allocation4], 256
    $region17: #{tpu_custom_call.1} parent=1 // pred_fallthru
      _
    %38 = vsyncpa [#allocation3], 1
    %39 = vsyncpa [#allocation4], 1

</llo_original>
